<compile_context>
chip_gen: v5e
topology: v5e:2x2
jax: 0.10.0
libtpu: 0.0.40
codegen_flags: <defaults>
</compile_context>

<pallas_src>
import functools

import jax
import jax.numpy as jnp
from jax import lax
from jax.experimental import pallas as pl
from jax.experimental.pallas import tpu as pltpu

_TIME_BLOCK_CAP = 256     # max recurrence steps handled per grid iteration
_FULL_UNROLL_MAX = 32     # <= this many steps: fully unroll the recurrence


def _hippo_kernel(x_ref, wih_ref, whh_ref, bh_ref, wout_ref, bout_ref,
                  out_ref, *scratch,
                  t_blk, b_pad, seq, needs_mask, multi_block, full_unroll):
    tb = pl.program_id(0)
    hidden = whh_ref.shape[1]

    si = 0
    h_scratch = None
    u_scratch = None
    if multi_block:
        h_scratch = scratch[si]
        si += 1
    if not full_unroll:
        u_scratch = scratch[si]
        si += 1

    # ---- Phase 1: batched input projection for the whole time block -------
    # One MXU call (t_blk*b_pad, D) x (D, H) off the serial chain; the bias
    # broadcast is hoisted here too.
    u = (jnp.dot(x_ref[...], wih_ref[...],
                 preferred_element_type=jnp.float32)
         + bh_ref[...])                                   # (t_blk*b_pad, H)

    whh = whh_ref[...]                                    # (H, H), loaded once

    # ---- Hidden state ------------------------------------------------------
    if multi_block:
        @pl.when(tb == 0)
        def _():
            h_scratch[...] = jnp.zeros_like(h_scratch)
        h = h_scratch[...]                                # (b_pad, H)
    else:
        # Single time block: no VMEM round-trip, h lives in registers.
        h = jnp.zeros((b_pad, hidden), jnp.float32)

    # Only step indices that can actually fall past the true sequence length
    # need a mask (static decision; no mask code when t_blk divides seq).
    rem = seq % t_blk

    # ---- Phase 2: serial tanh recurrence -----------------------------------
    if full_unroll:
        for t in range(t_blk):                            # static unroll
            u_t = u[t * b_pad:(t + 1) * b_pad, :]         # sublane-aligned view
            h_new = jnp.tanh(
                jnp.dot(h, whh, preferred_element_type=jnp.float32) + u_t)
            if needs_mask and t >= rem:
                h = jnp.where(tb * t_blk + t < seq, h_new, h)
            else:
                h = h_new
    else:
        # Large block: stage u in VMEM, bounded-unroll loop with h as carry.
        u_scratch[...] = u

        def body(t, h_carry):
            start = pl.multiple_of(t * b_pad, b_pad)
            u_t = u_scratch[pl.ds(start, b_pad), :]
            h_new = jnp.tanh(
                jnp.dot(h_carry, whh, preferred_element_type=jnp.float32)
                + u_t)
            if needs_mask:
                h_new = jnp.where(tb * t_blk + t < seq, h_new, h_carry)
            return h_new

        h = lax.fori_loop(0, t_blk, body, h, unroll=8)

    # ---- Fused output projection on the final hidden state -----------------
    if multi_block:
        h_scratch[...] = h

        @pl.when(tb == pl.num_programs(0) - 1)
        def _():
            out_ref[...] = (jnp.dot(h, wout_ref[...],
                                    preferred_element_type=jnp.float32)
                            + bout_ref[...])
    else:
        out_ref[...] = (jnp.dot(h, wout_ref[...],
                                preferred_element_type=jnp.float32)
                        + bout_ref[...])


def _choose_time_block(seq, cap=_TIME_BLOCK_CAP):
    """Number of recurrence steps per grid iteration.

    Uses min(seq, cap); non-dividing seq is handled by wrapper-side time
    padding + in-kernel masking (never degrades to t_blk=1).
    """
    return min(seq, cap)


def hippo_forward(ts, w_ih, w_hh, b_h, w_out, b_out, t_blk=None):
    """ts: (batch, input_dim, seq) float32. Returns (batch, future)."""
    batch, input_dim, seq = ts.shape
    hidden_dim = w_hh.shape[0]
    future = w_out.shape[0]

    if t_blk is None:
        t_blk = _choose_time_block(seq)
    t_blk = min(t_blk, seq)

    n_blocks = -(-seq // t_blk)              # ceil div
    seq_pad = n_blocks * t_blk
    needs_mask = seq_pad != seq              # padded steps masked in-kernel
    b_pad = ((batch + 7) // 8) * 8           # sublane-aligned batch
    multi_block = n_blocks > 1
    full_unroll = t_blk <= _FULL_UNROLL_MAX

    # (batch, input_dim, seq) -> (seq, batch, input_dim); pad batch to b_pad
    # (independent zero rows, sliced off at the end) and time to seq_pad
    # (masked in-kernel, never touches h).  Row r = t*b_pad + b, so time block
    # i is the contiguous row range [i*t_blk*b_pad, (i+1)*t_blk*b_pad).
    # At scale, fold this transpose into the x BlockSpec instead (it is an
    # extra HBM round-trip of x); at these shapes it is noise.
    x = jnp.transpose(ts, (2, 0, 1)).astype(jnp.float32)  # (seq, B, D)
    if b_pad != batch or seq_pad != seq:
        x = jnp.pad(x, ((0, seq_pad - seq), (0, b_pad - batch), (0, 0)))
    x2d = x.reshape(seq_pad * b_pad, input_dim)

    # Pre-transpose weights to (in, out) so the kernel does plain x @ W.
    wih_t = jnp.asarray(w_ih, jnp.float32).T          # (input_dim, hidden_dim)
    whh_t = jnp.asarray(w_hh, jnp.float32).T          # (hidden_dim, hidden_dim)
    bh2 = jnp.asarray(b_h, jnp.float32).reshape(1, hidden_dim)
    wout_t = jnp.asarray(w_out, jnp.float32).T        # (hidden_dim, future)
    bout2 = jnp.asarray(b_out, jnp.float32).reshape(1, future)

    vmem = pltpu.MemorySpace.VMEM
    scratch_shapes = []
    if multi_block:
        scratch_shapes.append(pltpu.VMEM((b_pad, hidden_dim), jnp.float32))
    if not full_unroll:
        scratch_shapes.append(
            pltpu.VMEM((t_blk * b_pad, hidden_dim), jnp.float32))

    kernel = functools.partial(
        _hippo_kernel, t_blk=t_blk, b_pad=b_pad, seq=seq,
        needs_mask=needs_mask, multi_block=multi_block,
        full_unroll=full_unroll)

    out = pl.pallas_call(
        kernel,
        out_shape=jax.ShapeDtypeStruct((b_pad, future), jnp.float32),
        grid_spec=pltpu.PrefetchScalarGridSpec(
            num_scalar_prefetch=0,
            grid=(n_blocks,),
            in_specs=[
                # x time block, default 2-deep pipelining (tiny DMA, hidden).
                pl.BlockSpec((t_blk * b_pad, input_dim), lambda i: (i, 0)),
                # Constant operands: untiled, single-resident in VMEM (no
                # per-step double-buffering of weights).
                pl.BlockSpec(memory_space=vmem),      # W_ih^T
                pl.BlockSpec(memory_space=vmem),      # W_hh^T
                pl.BlockSpec(memory_space=vmem),      # b_h
                pl.BlockSpec(memory_space=vmem),      # W_out^T
                pl.BlockSpec(memory_space=vmem),      # b_out
            ],
            out_specs=pl.BlockSpec((b_pad, future), lambda i: (0, 0)),
            scratch_shapes=scratch_shapes,
        ),
        compiler_params=pltpu.CompilerParams(
            # Recurrence: the time-block axis MUST stay sequential so the
            # resident hidden state and final-step output write are valid.
            dimension_semantics=("arbitrary",)),
    )(x2d, wih_t, whh_t, bh2, wout_t, bout2)
    return out[:batch]


def hippo_reference(ts, w_ih, w_hh, b_h, w_out, b_out):
    """Pure-JAX reference for correctness checking."""
    x = jnp.transpose(ts, (2, 0, 1)).astype(jnp.float32)  # (seq, B, D)
    h = jnp.zeros((x.shape[1], w_hh.shape[0]), jnp.float32)
    for t in range(x.shape[0]):
        h = jnp.tanh(x[t] @ w_ih.T + h @ w_hh.T + b_h)
    return h @ w_out.T + b_out


if __name__ == "__main__":
    # Small shapes consistent with the module: batch=2, input_dim=4, seq=8,
    # hidden_dim=32, future=8.
    batch, input_dim, seq = 2, 4, 8
    hidden_dim, future = 32, 8

    key = jax.random.PRNGKey(0)
    k_ts, k_ih, k_hh, k_bh, k_out, k_bout = jax.random.split(key, 6)

    ts = jax.random.normal(k_ts, (batch, input_dim, seq), dtype=jnp.float32)

    # Deterministic parameter init (shapes from the module's __init__).
    w_ih = 0.1 * jax.random.normal(k_ih, (hidden_dim, input_dim), jnp.float32)
    # Orthogonal recurrent matrix (OrthogonalCell): QR of a random matrix.
    w_hh, _ = jnp.linalg.qr(
        jax.random.normal(k_hh, (hidden_dim, hidden_dim), jnp.float32))
    b_h = 0.01 * jax.random.normal(k_bh, (hidden_dim,), jnp.float32)
    w_out = 0.1 * jax.random.normal(k_out, (future, hidden_dim), jnp.float32)
    b_out = 0.01 * jax.random.normal(k_bout, (future,), jnp.float32)

    pred = hippo_forward(ts, w_ih, w_hh, b_h, w_out, b_out)
    jax.block_until_ready(pred)

    ref = hippo_reference(ts, w_ih, w_hh, b_h, w_out, b_out)
    assert pred.shape == (batch, future)
    assert jnp.allclose(pred, ref, atol=1e-5, rtol=1e-5)

    print("KERNEL_OK")
</pallas_src>

<mosaic_0001>
module attributes {stable_mosaic.version = 11 : i64} {
  func.func @_hippo_kernel(%arg0: i32, %arg1: memref<64x4xf32, #tpu.memory_space<vmem>>, %arg2: memref<4x32xf32, #tpu.memory_space<vmem>>, %arg3: memref<32x32xf32, #tpu.memory_space<vmem>>, %arg4: memref<1x32xf32, #tpu.memory_space<vmem>>, %arg5: memref<32x8xf32, #tpu.memory_space<vmem>>, %arg6: memref<1x8xf32, #tpu.memory_space<vmem>>, %arg7: memref<8x8xf32, #tpu.memory_space<vmem>>) attributes {dimension_semantics = [#tpu.dimension_semantics<arbitrary>], iteration_bounds = array<i64: 1>, scalar_prefetch = 0 : i64, scratch_operands = 0 : i64, tpu.core_type = #tpu.core_type<tc>, window_params = [{transform_indices = @transform_0, window_bounds = array<i64: 64, 4>}, {pipeline_mode = #tpu.pipeline_mode<synchronous>, transform_indices = @transform_1, window_bounds = array<i64: 4, 32>}, {pipeline_mode = #tpu.pipeline_mode<synchronous>, transform_indices = @transform_2, window_bounds = array<i64: 32, 32>}, {pipeline_mode = #tpu.pipeline_mode<synchronous>, transform_indices = @transform_3, window_bounds = array<i64: 1, 32>}, {pipeline_mode = #tpu.pipeline_mode<synchronous>, transform_indices = @transform_4, window_bounds = array<i64: 32, 8>}, {pipeline_mode = #tpu.pipeline_mode<synchronous>, transform_indices = @transform_5, window_bounds = array<i64: 1, 8>}, {pipeline_mode = #tpu.pipeline_mode<synchronous>, transform_indices = @transform_6, window_bounds = array<i64: 8, 8>}]} {
    %c0 = arith.constant 0 : index
    %c0_0 = arith.constant 0 : index
    %0 = vector.load %arg1[%c0, %c0_0] : memref<64x4xf32, #tpu.memory_space<vmem>>, vector<64x4xf32>
    %c0_1 = arith.constant 0 : index
    %c0_2 = arith.constant 0 : index
    %1 = vector.load %arg2[%c0_1, %c0_2] : memref<4x32xf32, #tpu.memory_space<vmem>>, vector<4x32xf32>
    %cst = arith.constant dense<0.000000e+00> : vector<64x32xf32>
    %2 = tpu.matmul %0, %1, %cst {dimension_numbers = #tpu.dot_dimension_numbers<[1], [0], [0], [1], [0, 0, 1, 1], [], []>} : vector<64x4xf32>, vector<4x32xf32>, vector<64x32xf32> -> vector<64x32xf32>
    %c0_3 = arith.constant 0 : index
    %c0_4 = arith.constant 0 : index
    %3 = vector.load %arg4[%c0_3, %c0_4] : memref<1x32xf32, #tpu.memory_space<vmem>>, vector<1x32xf32>
    %4 = vector.broadcast %3 : vector<1x32xf32> to vector<64x32xf32>
    %5 = arith.addf %2, %4 : vector<64x32xf32>
    %c0_5 = arith.constant 0 : index
    %c0_6 = arith.constant 0 : index
    %6 = vector.load %arg3[%c0_5, %c0_6] : memref<32x32xf32, #tpu.memory_space<vmem>>, vector<32x32xf32>
    %cst_7 = arith.constant 0.000000e+00 : f32
    %7 = vector.broadcast %cst_7 : f32 to vector<8x32xf32>
    %8 = vector.extract_strided_slice %5 {offsets = [0, 0], sizes = [8, 32], strides = [1, 1]} : vector<64x32xf32> to vector<8x32xf32>
    %cst_8 = arith.constant dense<0.000000e+00> : vector<8x32xf32>
    %9 = tpu.matmul %7, %6, %cst_8 {dimension_numbers = #tpu.dot_dimension_numbers<[1], [0], [0], [1], [0, 0, 1, 1], [], []>} : vector<8x32xf32>, vector<32x32xf32>, vector<8x32xf32> -> vector<8x32xf32>
    %10 = arith.addf %9, %8 : vector<8x32xf32>
    %11 = math.tanh %10 : vector<8x32xf32>
    %12 = vector.extract_strided_slice %5 {offsets = [8, 0], sizes = [8, 32], strides = [1, 1]} : vector<64x32xf32> to vector<8x32xf32>
    %cst_9 = arith.constant dense<0.000000e+00> : vector<8x32xf32>
    %13 = tpu.matmul %11, %6, %cst_9 {dimension_numbers = #tpu.dot_dimension_numbers<[1], [0], [0], [1], [0, 0, 1, 1], [], []>} : vector<8x32xf32>, vector<32x32xf32>, vector<8x32xf32> -> vector<8x32xf32>
    %14 = arith.addf %13, %12 : vector<8x32xf32>
    %15 = math.tanh %14 : vector<8x32xf32>
    %16 = vector.extract_strided_slice %5 {offsets = [16, 0], sizes = [8, 32], strides = [1, 1]} : vector<64x32xf32> to vector<8x32xf32>
    %cst_10 = arith.constant dense<0.000000e+00> : vector<8x32xf32>
    %17 = tpu.matmul %15, %6, %cst_10 {dimension_numbers = #tpu.dot_dimension_numbers<[1], [0], [0], [1], [0, 0, 1, 1], [], []>} : vector<8x32xf32>, vector<32x32xf32>, vector<8x32xf32> -> vector<8x32xf32>
    %18 = arith.addf %17, %16 : vector<8x32xf32>
    %19 = math.tanh %18 : vector<8x32xf32>
    %20 = vector.extract_strided_slice %5 {offsets = [24, 0], sizes = [8, 32], strides = [1, 1]} : vector<64x32xf32> to vector<8x32xf32>
    %cst_11 = arith.constant dense<0.000000e+00> : vector<8x32xf32>
    %21 = tpu.matmul %19, %6, %cst_11 {dimension_numbers = #tpu.dot_dimension_numbers<[1], [0], [0], [1], [0, 0, 1, 1], [], []>} : vector<8x32xf32>, vector<32x32xf32>, vector<8x32xf32> -> vector<8x32xf32>
    %22 = arith.addf %21, %20 : vector<8x32xf32>
    %23 = math.tanh %22 : vector<8x32xf32>
    %24 = vector.extract_strided_slice %5 {offsets = [32, 0], sizes = [8, 32], strides = [1, 1]} : vector<64x32xf32> to vector<8x32xf32>
    %cst_12 = arith.constant dense<0.000000e+00> : vector<8x32xf32>
    %25 = tpu.matmul %23, %6, %cst_12 {dimension_numbers = #tpu.dot_dimension_numbers<[1], [0], [0], [1], [0, 0, 1, 1], [], []>} : vector<8x32xf32>, vector<32x32xf32>, vector<8x32xf32> -> vector<8x32xf32>
    %26 = arith.addf %25, %24 : vector<8x32xf32>
    %27 = math.tanh %26 : vector<8x32xf32>
    %28 = vector.extract_strided_slice %5 {offsets = [40, 0], sizes = [8, 32], strides = [1, 1]} : vector<64x32xf32> to vector<8x32xf32>
    %cst_13 = arith.constant dense<0.000000e+00> : vector<8x32xf32>
    %29 = tpu.matmul %27, %6, %cst_13 {dimension_numbers = #tpu.dot_dimension_numbers<[1], [0], [0], [1], [0, 0, 1, 1], [], []>} : vector<8x32xf32>, vector<32x32xf32>, vector<8x32xf32> -> vector<8x32xf32>
    %30 = arith.addf %29, %28 : vector<8x32xf32>
    %31 = math.tanh %30 : vector<8x32xf32>
    %32 = vector.extract_strided_slice %5 {offsets = [48, 0], sizes = [8, 32], strides = [1, 1]} : vector<64x32xf32> to vector<8x32xf32>
    %cst_14 = arith.constant dense<0.000000e+00> : vector<8x32xf32>
    %33 = tpu.matmul %31, %6, %cst_14 {dimension_numbers = #tpu.dot_dimension_numbers<[1], [0], [0], [1], [0, 0, 1, 1], [], []>} : vector<8x32xf32>, vector<32x32xf32>, vector<8x32xf32> -> vector<8x32xf32>
    %34 = arith.addf %33, %32 : vector<8x32xf32>
    %35 = math.tanh %34 : vector<8x32xf32>
    %36 = vector.extract_strided_slice %5 {offsets = [56, 0], sizes = [8, 32], strides = [1, 1]} : vector<64x32xf32> to vector<8x32xf32>
    %cst_15 = arith.constant dense<0.000000e+00> : vector<8x32xf32>
    %37 = tpu.matmul %35, %6, %cst_15 {dimension_numbers = #tpu.dot_dimension_numbers<[1], [0], [0], [1], [0, 0, 1, 1], [], []>} : vector<8x32xf32>, vector<32x32xf32>, vector<8x32xf32> -> vector<8x32xf32>
    %38 = arith.addf %37, %36 : vector<8x32xf32>
    %39 = math.tanh %38 : vector<8x32xf32>
    %c0_16 = arith.constant 0 : index
    %c0_17 = arith.constant 0 : index
    %40 = vector.load %arg5[%c0_16, %c0_17] : memref<32x8xf32, #tpu.memory_space<vmem>>, vector<32x8xf32>
    %cst_18 = arith.constant dense<0.000000e+00> : vector<8x8xf32>
    %41 = tpu.matmul %39, %40, %cst_18 {dimension_numbers = #tpu.dot_dimension_numbers<[1], [0], [0], [1], [0, 0, 1, 1], [], []>} : vector<8x32xf32>, vector<32x8xf32>, vector<8x8xf32> -> vector<8x8xf32>
    %c0_19 = arith.constant 0 : index
    %c0_20 = arith.constant 0 : index
    %42 = vector.load %arg6[%c0_19, %c0_20] : memref<1x8xf32, #tpu.memory_space<vmem>>, vector<1x8xf32>
    %43 = vector.broadcast %42 : vector<1x8xf32> to vector<8x8xf32>
    %44 = arith.addf %41, %43 : vector<8x8xf32>
    %c0_21 = arith.constant 0 : index
    %c0_22 = arith.constant 0 : index
    %45 = vector.load %arg7[%c0_21, %c0_22] : memref<8x8xf32, #tpu.memory_space<vmem>>, vector<8x8xf32>
    tpu.vector_store %arg7[%c0_21, %c0_22], %44 {strides = array<i32>} : memref<8x8xf32, #tpu.memory_space<vmem>>, vector<8x8xf32>,
    return
  }
  func.func @transform_0(%arg0: i32) -> (i32, i32) {
    %c0_i32 = arith.constant 0 : i32
    %c0_i32_0 = arith.constant 0 : i32
    return %arg0, %c0_i32 : i32, i32
  }
  func.func @transform_1(%arg0: i32) -> (i32, i32) {
    %c0_i32 = arith.constant 0 : i32
    %c0_i32_0 = arith.constant 0 : i32
    %c0_i32_1 = arith.constant 0 : i32
    return %c0_i32, %c0_i32_0 : i32, i32
  }
  func.func @transform_2(%arg0: i32) -> (i32, i32) {
    %c0_i32 = arith.constant 0 : i32
    %c0_i32_0 = arith.constant 0 : i32
    %c0_i32_1 = arith.constant 0 : i32
    return %c0_i32, %c0_i32_0 : i32, i32
  }
  func.func @transform_3(%arg0: i32) -> (i32, i32) {
    %c0_i32 = arith.constant 0 : i32
    %c0_i32_0 = arith.constant 0 : i32
    %c0_i32_1 = arith.constant 0 : i32
    return %c0_i32, %c0_i32_0 : i32, i32
  }
  func.func @transform_4(%arg0: i32) -> (i32, i32) {
    %c0_i32 = arith.constant 0 : i32
    %c0_i32_0 = arith.constant 0 : i32
    %c0_i32_1 = arith.constant 0 : i32
    return %c0_i32, %c0_i32_0 : i32, i32
  }
  func.func @transform_5(%arg0: i32) -> (i32, i32) {
    %c0_i32 = arith.constant 0 : i32
    %c0_i32_0 = arith.constant 0 : i32
    %c0_i32_1 = arith.constant 0 : i32
    return %c0_i32, %c0_i32_0 : i32, i32
  }
  func.func @transform_6(%arg0: i32) -> (i32, i32) {
    %c0_i32 = arith.constant 0 : i32
    %c0_i32_0 = arith.constant 0 : i32
    %c0_i32_1 = arith.constant 0 : i32
    return %c0_i32, %c0_i32_0 : i32, i32
  }
}

</mosaic_0001>

<llo_original>
// kernel: tpu_custom_call.1
$region0: #{tpu_custom_call.1}
  #allocation0 [shape = 'u32[]', space=smem, size = 0x4, offset = 0x4, fixed_abs, tag = 'smem constant byte address 0x4 - core index']
  #allocation1 [shape = 'u32[72,128]{1,0:T(1,128)}', space=vmem, size = 0x9000, scoped, tag = 'internal scratch']
  %s0 = inlined_call_operand.vmem [shape: f32[64,4], index: 0, kind: input, shape index: {}]
  %s1 = inlined_call_operand.vmem [shape: f32[4,32], index: 1, kind: input, shape index: {}]
  %s2 = inlined_call_operand.vmem [shape: f32[32,32], index: 2, kind: input, shape index: {}]
  %s3 = inlined_call_operand.vmem [shape: f32[1,32], index: 3, kind: input, shape index: {}]
  %s4 = inlined_call_operand.vmem [shape: f32[32,8], index: 4, kind: input, shape index: {}]
  %s5 = inlined_call_operand.vmem [shape: f32[1,8], index: 5, kind: input, shape index: {}]
  %s6 = inlined_call_operand.hbm [shape: f32[8,8], index: 6, kind: output, shape index: {}]
  %s7 = sld [smem:[#allocation0]]
  $region34: #{tpu_custom_call.1} parent=0
    _
  %s9 = ssub.s32 1, %s7
  %s10 = scalar_select 0, %s9, %s7
  $region1: #{tpu_custom_call.1} parent=0
    #allocation2 [shape = 'u8[4096]{0}', space=vmem, size = 0x1000, scoped, tag = 'output window, operand 0, single buffered']
    #allocation3 [shape = 's32[1]{0}', space=sflag, size = 0x4, scoped, tag = 'scoped memory for tpu_custom_call.1']
    %11 = vsyncpa [#allocation3], 0
    // Predicated region
    $region2: #{tpu_custom_call.1} parent=1 // pred_check
      _
    $region3: #{tpu_custom_call.1} parent=1 // pred_check_branch
      %13 = sbr.rel (0) target = $region5
    $region4: #{tpu_custom_call.1} parent=1 // pred_region
      _
    $region5: #{tpu_custom_call.1} parent=1 // pred_fallthru
      _
    // Predicated region
    $region6: #{tpu_custom_call.1} parent=1 // pred_check
      _
    $region7: #{tpu_custom_call.1} parent=1 // pred_check_branch
      %15 = sbr.rel (0) target = $region9
    $region8: #{tpu_custom_call.1} parent=1 // pred_region
      _
    $region9: #{tpu_custom_call.1} parent=1 // pred_fallthru
      _
    // Predicated region
    $region10: #{tpu_custom_call.1} parent=1 // pred_check
      _
    $region11: #{tpu_custom_call.1} parent=1 // pred_check_branch
      %17 = sbr.rel (0) target = $region13
    $region12: #{tpu_custom_call.1} parent=1 // pred_region
      _
    $region13: #{tpu_custom_call.1} parent=1 // pred_fallthru
      _
    // Predicated region
    $region14: #{tpu_custom_call.1} parent=1 // pred_check
      _
    $region15: #{tpu_custom_call.1} parent=1 // pred_check_branch
      %19 = sbr.rel (0) target = $region17
    $region16: #{tpu_custom_call.1} parent=1 // pred_region
      _
    $region17: #{tpu_custom_call.1} parent=1 // pred_fallthru
      _
    // Predicated region
    $region18: #{tpu_custom_call.1} parent=1 // pred_check
      _
    $region19: #{tpu_custom_call.1} parent=1 // pred_check_branch
      %21 = sbr.rel (0) target = $region21
    $region20: #{tpu_custom_call.1} parent=1 // pred_region
      _
    $region21: #{tpu_custom_call.1} parent=1 // pred_fallthru
      _
    // Predicated region
    $region22: #{tpu_custom_call.1} parent=1 // pred_check
      _
    $region23: #{tpu_custom_call.1} parent=1 // pred_check_branch
      %23 = sbr.rel (0) target = $region25
    $region24: #{tpu_custom_call.1} parent=1 // pred_region
      _
    $region25: #{tpu_custom_call.1} parent=1 // pred_fallthru
      _
    %v24 = vld [vmem:[%s0] sm:$0xff]
    %v25 = vld [vmem:[%s0 + $0x8] sm:$0xff]
    %v26 = vld [vmem:[%s0 + $0x10] sm:$0xff]
    %v27 = vld [vmem:[%s0 + $0x18] sm:$0xff]
    %v28 = vld [vmem:[%s0 + $0x20] sm:$0xff]
    %v29 = vld [vmem:[%s0 + $0x28] sm:$0xff]
    %v30 = vld [vmem:[%s0 + $0x30] sm:$0xff]
    %v31 = vld [vmem:[%s0 + $0x38] sm:$0xff]
    %v32 = vld [vmem:[%s1] sm:$0xf]
    %v33 = vld [vmem:[%s3] sm:$0x1]
    %v35 = vperm.slane %v33, 0
    %vm37 = vcmask 31744
    %v39 = vsel %vm37, %v24, 0
    %v42 = vsel %vm37, %v25, 0
    %v45 = vsel %vm37, %v26, 0
    %v48 = vsel %vm37, %v27, 0
    %v51 = vsel %vm37, %v28, 0
    %v54 = vsel %vm37, %v29, 0
    %v57 = vsel %vm37, %v30, 0
    %v60 = vsel %vm37, %v31, 0
    %vm62 = vcmask 1043456
    %v64 = vsel %vm62, %v32, 0
    %66 = vmatpush.msra.mxu0 0.0
    %67 = vmatpush.msra.mxu0 0.0
    %68 = vmatpush.msra.mxu0 0.0
    %69 = vmatpush.msra.mxu0 0.0
    %70 = vmatpush.msra.mxu0 0.0
    %71 = vmatpush.msra.mxu0 0.0
    %72 = vmatpush.msra.mxu0 0.0
    %73 = vmatpush.msra.mxu0 0.0
    %74 = vmatpush.msra.mxu0 0.0
    %75 = vmatpush.msra.mxu0 0.0
    %76 = vmatpush.msra.mxu0 0.0
    %77 = vmatpush.msra.mxu0 0.0
    %78 = vmatpush.msra.mxu0 0.0
    %79 = vmatpush.msra.mxu0 0.0
    %80 = vmatpush.msra.mxu0 0.0
    %81 = vmatpush.msra.mxu0 %v64
    %82 = vmatmul.f32.gmra.mxu0 %v39
    %v83 = vpop.f32.mrf.mxu0
    %v84 = vadd.f32 %v35, %v83
    %85 = vmatmul.f32.gmra.mxu0 %v42
    %v86 = vpop.f32.mrf.mxu0
    %v87 = vadd.f32 %v35, %v86
    %88 = vmatmul.f32.gmra.mxu0 %v45
    %v89 = vpop.f32.mrf.mxu0
    %v90 = vadd.f32 %v35, %v89
    %91 = vmatmul.f32.gmra.mxu0 %v48
    %v92 = vpop.f32.mrf.mxu0
    %v93 = vadd.f32 %v35, %v92
    %94 = vmatmul.f32.gmra.mxu0 %v51
    %v95 = vpop.f32.mrf.mxu0
    %v96 = vadd.f32 %v35, %v95
    %97 = vmatmul.f32.gmra.mxu0 %v54
    %v98 = vpop.f32.mrf.mxu0
    %v99 = vadd.f32 %v35, %v98
    %100 = vmatmul.f32.gmra.mxu0 %v57
    %v101 = vpop.f32.mrf.mxu0
    %v102 = vadd.f32 %v35, %v101
    %103 = vmatmul.f32.gmra.mxu0 %v60
    %v104 = vpop.f32.mrf.mxu0
    %v105 = vadd.f32 %v35, %v104
    %106 = vdwg.mxu0
    %v107 = vld [vmem:[%s2] sm:$0xff]
    %v108 = vld [vmem:[%s2 + $0x8] sm:$0xff]
    %v109 = vld [vmem:[%s2 + $0x10] sm:$0xff]
    %v110 = vld [vmem:[%s2 + $0x18] sm:$0xff]
    %vm111 = vcmask 261120
    %v113 = vsel %vm111, 0.0, 0
    %115 = vmatpush.msra.mxu0 0.0
    %116 = vmatpush.msra.mxu0 0.0
    %117 = vmatpush.msra.mxu0 0.0
    %118 = vmatpush.msra.mxu0 0.0
    %119 = vmatpush.msra.mxu0 0.0
    %120 = vmatpush.msra.mxu0 0.0
    %121 = vmatpush.msra.mxu0 0.0
    %122 = vmatpush.msra.mxu0 0.0
    %123 = vmatpush.msra.mxu0 0.0
    %124 = vmatpush.msra.mxu0 0.0
    %125 = vmatpush.msra.mxu0 0.0
    %126 = vmatpush.msra.mxu0 0.0
    %127 = vmatpush.msra.mxu0 %v110
    %128 = vmatpush.msra.mxu0 %v109
    %129 = vmatpush.msra.mxu0 %v108
    %130 = vmatpush.msra.mxu0 %v107
    %131 = vmatmul.f32.gmra.mxu0 %v113
    %v132 = vpop.f32.mrf.mxu0
    %v133 = vadd.f32 %v84, %v132
    %134 = vdwg.mxu0
    %v135 = vtanh.pop %v133
    %v137 = vsel %vm111, %v135, 0
    %139 = vmatpush.msra.mxu0 0.0
    %140 = vmatpush.msra.mxu0 0.0
    %141 = vmatpush.msra.mxu0 0.0
    %142 = vmatpush.msra.mxu0 0.0
    %143 = vmatpush.msra.mxu0 0.0
    %144 = vmatpush.msra.mxu0 0.0
    %145 = vmatpush.msra.mxu0 0.0
    %146 = vmatpush.msra.mxu0 0.0
    %147 = vmatpush.msra.mxu0 0.0
    %148 = vmatpush.msra.mxu0 0.0
    %149 = vmatpush.msra.mxu0 0.0
    %150 = vmatpush.msra.mxu0 0.0
    %151 = vmatpush.msra.mxu0 %v110
    %152 = vmatpush.msra.mxu0 %v109
    %153 = vmatpush.msra.mxu0 %v108
    %154 = vmatpush.msra.mxu0 %v107
    %155 = vmatmul.f32.gmra.mxu0 %v137
    %v156 = vpop.f32.mrf.mxu0
    %v157 = vadd.f32 %v87, %v156
    %158 = vdwg.mxu0
    %v159 = vtanh.pop %v157
    %v161 = vsel %vm111, %v159, 0
    %163 = vmatpush.msra.mxu0 0.0
    %164 = vmatpush.msra.mxu0 0.0
    %165 = vmatpush.msra.mxu0 0.0
    %166 = vmatpush.msra.mxu0 0.0
    %167 = vmatpush.msra.mxu0 0.0
    %168 = vmatpush.msra.mxu0 0.0
    %169 = vmatpush.msra.mxu0 0.0
    %170 = vmatpush.msra.mxu0 0.0
    %171 = vmatpush.msra.mxu0 0.0
    %172 = vmatpush.msra.mxu0 0.0
    %173 = vmatpush.msra.mxu0 0.0
    %174 = vmatpush.msra.mxu0 0.0
    %175 = vmatpush.msra.mxu0 %v110
    %176 = vmatpush.msra.mxu0 %v109
    %177 = vmatpush.msra.mxu0 %v108
    %178 = vmatpush.msra.mxu0 %v107
    %179 = vmatmul.f32.gmra.mxu0 %v161
    %v180 = vpop.f32.mrf.mxu0
    %v181 = vadd.f32 %v90, %v180
    %182 = vdwg.mxu0
    %v183 = vtanh.pop %v181
    %v185 = vsel %vm111, %v183, 0
    %187 = vmatpush.msra.mxu0 0.0
    %188 = vmatpush.msra.mxu0 0.0
    %189 = vmatpush.msra.mxu0 0.0
    %190 = vmatpush.msra.mxu0 0.0
    %191 = vmatpush.msra.mxu0 0.0
    %192 = vmatpush.msra.mxu0 0.0
    %193 = vmatpush.msra.mxu0 0.0
    %194 = vmatpush.msra.mxu0 0.0
    %195 = vmatpush.msra.mxu0 0.0
    %196 = vmatpush.msra.mxu0 0.0
    %197 = vmatpush.msra.mxu0 0.0
    %198 = vmatpush.msra.mxu0 0.0
    %199 = vmatpush.msra.mxu0 %v110
    %200 = vmatpush.msra.mxu0 %v109
    %201 = vmatpush.msra.mxu0 %v108
    %202 = vmatpush.msra.mxu0 %v107
    %203 = vmatmul.f32.gmra.mxu0 %v185
    %v204 = vpop.f32.mrf.mxu0
    %v205 = vadd.f32 %v93, %v204
    %206 = vdwg.mxu0
    %v207 = vtanh.pop %v205
    %v209 = vsel %vm111, %v207, 0
    %211 = vmatpush.msra.mxu0 0.0
    %212 = vmatpush.msra.mxu0 0.0
    %213 = vmatpush.msra.mxu0 0.0
    %214 = vmatpush.msra.mxu0 0.0
    %215 = vmatpush.msra.mxu0 0.0
    %216 = vmatpush.msra.mxu0 0.0
    %217 = vmatpush.msra.mxu0 0.0
    %218 = vmatpush.msra.mxu0 0.0
    %219 = vmatpush.msra.mxu0 0.0
    %220 = vmatpush.msra.mxu0 0.0
    %221 = vmatpush.msra.mxu0 0.0
    %222 = vmatpush.msra.mxu0 0.0
    %223 = vmatpush.msra.mxu0 %v110
    %224 = vmatpush.msra.mxu0 %v109
    %225 = vmatpush.msra.mxu0 %v108
    %226 = vmatpush.msra.mxu0 %v107
    %227 = vmatmul.f32.gmra.mxu0 %v209
    %v228 = vpop.f32.mrf.mxu0
    %v229 = vadd.f32 %v96, %v228
    %230 = vdwg.mxu0
    %v231 = vtanh.pop %v229
    %v233 = vsel %vm111, %v231, 0
    %235 = vmatpush.msra.mxu0 0.0
    %236 = vmatpush.msra.mxu0 0.0
    %237 = vmatpush.msra.mxu0 0.0
    %238 = vmatpush.msra.mxu0 0.0
    %239 = vmatpush.msra.mxu0 0.0
    %240 = vmatpush.msra.mxu0 0.0
    %241 = vmatpush.msra.mxu0 0.0
    %242 = vmatpush.msra.mxu0 0.0
    %243 = vmatpush.msra.mxu0 0.0
    %244 = vmatpush.msra.mxu0 0.0
    %245 = vmatpush.msra.mxu0 0.0
    %246 = vmatpush.msra.mxu0 0.0
    %247 = vmatpush.msra.mxu0 %v110
    %248 = vmatpush.msra.mxu0 %v109
    %249 = vmatpush.msra.mxu0 %v108
    %250 = vmatpush.msra.mxu0 %v107
    %251 = vmatmul.f32.gmra.mxu0 %v233
    %v252 = vpop.f32.mrf.mxu0
    %v253 = vadd.f32 %v99, %v252
    %254 = vdwg.mxu0
    %v255 = vtanh.pop %v253
    %v257 = vsel %vm111, %v255, 0
    %259 = vmatpush.msra.mxu0 0.0
    %260 = vmatpush.msra.mxu0 0.0
    %261 = vmatpush.msra.mxu0 0.0
    %262 = vmatpush.msra.mxu0 0.0
    %263 = vmatpush.msra.mxu0 0.0
    %264 = vmatpush.msra.mxu0 0.0
    %265 = vmatpush.msra.mxu0 0.0
    %266 = vmatpush.msra.mxu0 0.0
    %267 = vmatpush.msra.mxu0 0.0
    %268 = vmatpush.msra.mxu0 0.0
    %269 = vmatpush.msra.mxu0 0.0
    %270 = vmatpush.msra.mxu0 0.0
    %271 = vmatpush.msra.mxu0 %v110
    %272 = vmatpush.msra.mxu0 %v109
    %273 = vmatpush.msra.mxu0 %v108
    %274 = vmatpush.msra.mxu0 %v107
    %275 = vmatmul.f32.gmra.mxu0 %v257
    %v276 = vpop.f32.mrf.mxu0
    %v277 = vadd.f32 %v102, %v276
    %278 = vdwg.mxu0
    %v279 = vtanh.pop %v277
    %v281 = vsel %vm111, %v279, 0
    %283 = vmatpush.msra.mxu0 0.0
    %284 = vmatpush.msra.mxu0 0.0
    %285 = vmatpush.msra.mxu0 0.0
    %286 = vmatpush.msra.mxu0 0.0
    %287 = vmatpush.msra.mxu0 0.0
    %288 = vmatpush.msra.mxu0 0.0
    %289 = vmatpush.msra.mxu0 0.0
    %290 = vmatpush.msra.mxu0 0.0
    %291 = vmatpush.msra.mxu0 0.0
    %292 = vmatpush.msra.mxu0 0.0
    %293 = vmatpush.msra.mxu0 0.0
    %294 = vmatpush.msra.mxu0 0.0
    %295 = vmatpush.msra.mxu0 %v110
    %296 = vmatpush.msra.mxu0 %v109
    %297 = vmatpush.msra.mxu0 %v108
    %298 = vmatpush.msra.mxu0 %v107
    %299 = vmatmul.f32.gmra.mxu0 %v281
    %v300 = vpop.f32.mrf.mxu0
    %v301 = vadd.f32 %v105, %v300
    %302 = vdwg.mxu0
    %v303 = vtanh.pop %v301
    %v304 = vld [vmem:[%s4] sm:$0xff]
    %v305 = vld [vmem:[%s4 + $0x8] sm:$0xff]
    %v306 = vld [vmem:[%s4 + $0x10] sm:$0xff]
    %v307 = vld [vmem:[%s4 + $0x18] sm:$0xff]
    %v308 = vld [vmem:[%s5] sm:$0x1]
    %v310 = vperm.slane %v308, 0
    %v313 = vsel %vm111, %v303, 0
    %315 = vmatpush.msra.mxu0 0.0
    %316 = vmatpush.msra.mxu0 0.0
    %317 = vmatpush.msra.mxu0 0.0
    %318 = vmatpush.msra.mxu0 0.0
    %319 = vmatpush.msra.mxu0 0.0
    %320 = vmatpush.msra.mxu0 0.0
    %321 = vmatpush.msra.mxu0 0.0
    %322 = vmatpush.msra.mxu0 0.0
    %323 = vmatpush.msra.mxu0 0.0
    %324 = vmatpush.msra.mxu0 0.0
    %325 = vmatpush.msra.mxu0 0.0
    %326 = vmatpush.msra.mxu0 0.0
    %327 = vmatpush.msra.mxu0 %v307
    %328 = vmatpush.msra.mxu0 %v306
    %329 = vmatpush.msra.mxu0 %v305
    %330 = vmatpush.msra.mxu0 %v304
    %331 = vmatmul.f32.gmra.mxu0 %v313
    %v332 = vpop.f32.mrf.mxu0
    %v333 = vadd.f32 %v310, %v332
    %334 = vdwg.mxu0
    %vm335 = vcmask 64512
    %336 = vst.msk [vmem:[#allocation2] sm:$0xff] %vm335, %v333
    // Predicated region
    $region26: #{tpu_custom_call.1} parent=1 // pred_check
      _
    $region27: #{tpu_custom_call.1} parent=1 // pred_check_branch
      %338 = sbr.rel (0) target = $region29
    $region28: #{tpu_custom_call.1} parent=1 // pred_region
      %340 = vsyncadd [#allocation3], 0
      %s342 = sshll.u32 [#allocation2], 4
      %s343 = int_to_ptr.vmem [resolvable:$true] %s342
      %s344 = sshll.u32 %s6, 4
      %s345 = int_to_ptr.hbm [resolvable:$true] %s344
      %347 = dma.vmem_to_hbm [thread:$0]  %s343, 128, %s345, [#allocation3]
    $region29: #{tpu_custom_call.1} parent=1 // pred_fallthru
      _
    // Predicated region
    $region30: #{tpu_custom_call.1} parent=1 // pred_check
      _
    $region31: #{tpu_custom_call.1} parent=1 // pred_check_branch
      %349 = sbr.rel (0) target = $region33
    $region32: #{tpu_custom_call.1} parent=1 // pred_region
      %351 = dma.done [#allocation3], 128
    $region33: #{tpu_custom_call.1} parent=1 // pred_fallthru
      _
    %352 = vsyncpa [#allocation3], 1

</llo_original>
